<compile_context>
chip_gen: v7x
topology: tpu7x:2x2x1
jax: 0.10.0
libtpu: 0.0.40
codegen_flags: <defaults>
</compile_context>

<pallas_src>
import jax
import jax.numpy as jnp
from jax.experimental import pallas as pl
from jax.experimental.pallas import tpu as pltpu

BOUNDARIES_SLOPE = 0.01
NEG_MULT = -BOUNDARIES_SLOPE  # multiplier applied where v1 <= 0


def _conv_leaky_kernel(w_ref, xs_ref, o_ref):
    # w_ref : (Cout, K_pad)   weight^T with bias folded in (VMEM-resident)
    # xs_ref: (K_pad, HW)     im2col columns for one batch image, lane axis = HW
    # o_ref : (Cout, HW)      lane-dense output tile (leading batch dim squeezed)
    acc = jnp.dot(w_ref[...], xs_ref[...], preferred_element_type=jnp.float32)
    o_ref[...] = jnp.where(acc > 0, acc, acc * NEG_MULT).astype(o_ref.dtype)


@jax.jit
def model3_forward(x_nchw, weight_oihw, bias):
    """x_nchw: (N, Cin, H, W) f32; weight: (Cout, Cin, 3, 3); bias: (Cout,)."""
    N, Cin, H, W = x_nchw.shape
    Cout, _, KH, KW = weight_oihw.shape
    HW = H * W
    M = N * HW
    K0 = KH * KW * Cin                       # 27
    K_pad = ((K0 + 1 + 7) // 8) * 8          # 32: taps + bias row, sublane aligned

    # ---- layout prep (XLA glue, single fusion): xs^T = (K_pad, M) ------------
    # k-order (dy, dx, cin); column order (n, h, w) so each batch owns a
    # contiguous lane-block of width HW.
    xt = jnp.transpose(x_nchw, (1, 0, 2, 3))                 # (Cin, N, H, W)
    xtp = jnp.pad(xt, ((0, 0), (0, 0), (1, 1), (1, 1)))      # (Cin, N, H+2, W+2)
    taps = jnp.stack(
        [xtp[:, :, dy:dy + H, dx:dx + W] for dy in range(KH) for dx in range(KW)],
        axis=0)                                              # (9, Cin, N, H, W)
    xs_t = taps.reshape(K0, M)                               # (27, M)
    xs_t = jnp.concatenate(
        [xs_t,
         jnp.ones((1, M), jnp.float32),                      # bias row
         jnp.zeros((K_pad - K0 - 1, M), jnp.float32)],       # sublane pad
        axis=0)                                              # (K_pad, M)

    # weight OIHW -> (Cout, KH, KW, Cin) -> (Cout, K0); bias folded as a column
    w_mat = jnp.transpose(weight_oihw, (0, 2, 3, 1)).reshape(Cout, K0)
    w_mat = jnp.concatenate(
        [w_mat,
         bias.reshape(Cout, 1),
         jnp.zeros((Cout, K_pad - K0 - 1), jnp.float32)],
        axis=1)                                              # (Cout, K_pad)

    # ---- Pallas hot path: per-batch (Cout,K_pad) @ (K_pad,HW) + leaky-where --
    out = pl.pallas_call(
        _conv_leaky_kernel,
        out_shape=jax.ShapeDtypeStruct((N, Cout, HW), jnp.float32),
        grid_spec=pl.GridSpec(
            grid=(N,),
            in_specs=[
                pl.BlockSpec((Cout, K_pad), lambda n: (0, 0)),      # resident W
                pl.BlockSpec((K_pad, HW), lambda n: (0, n)),        # batch n cols
            ],
            out_specs=pl.BlockSpec((pl.Squeezed(), Cout, HW),
                                   lambda n: (n, 0, 0)),
        ),
        compiler_params=pltpu.CompilerParams(
            dimension_semantics=("parallel",)),
        cost_estimate=pl.CostEstimate(
            flops=2 * Cout * K_pad * M,
            transcendentals=0,
            bytes_accessed=4 * (Cout * K_pad + K_pad * M + Cout * M)),
    )(w_mat, xs_t)

    return out.reshape(N, Cout, H, W)                        # already NCHW-ordered


def _reference(x_nchw, weight_oihw, bias):
    v1 = jax.lax.conv_general_dilated(
        x_nchw, weight_oihw, window_strides=(1, 1),
        padding=((1, 1), (1, 1)),
        dimension_numbers=("NCHW", "OIHW", "NCHW"))
    v1 = v1 + bias.reshape(1, -1, 1, 1)
    return jnp.where(v1 > 0, v1, v1 * NEG_MULT)


if __name__ == "__main__":
    key = jax.random.PRNGKey(0)
    kx, kw, kb = jax.random.split(key, 3)

    N, Cin, H, W = 2, 3, 16, 16
    Cout, KH, KW = 8, 3, 3

    x = jax.random.normal(kx, (N, Cin, H, W), dtype=jnp.float32)
    # deterministic PyTorch-style init: U(-1/sqrt(fan_in), 1/sqrt(fan_in))
    fan_in = Cin * KH * KW
    bound = 1.0 / (fan_in ** 0.5)
    weight = jax.random.uniform(kw, (Cout, Cin, KH, KW),
                                minval=-bound, maxval=bound, dtype=jnp.float32)
    bias = jax.random.uniform(kb, (Cout,),
                              minval=-bound, maxval=bound, dtype=jnp.float32)

    out = model3_forward(x, weight, bias)
    out = jax.block_until_ready(out)

    ref = _reference(x, weight, bias)
    assert out.shape == (N, Cout, H, W), out.shape
    assert jnp.allclose(out, ref, atol=1e-4, rtol=1e-4), "mismatch vs reference conv"

    print("KERNEL_OK")
</pallas_src>

<mosaic_0001>
module attributes {stable_mosaic.version = 11 : i64} {
  func.func @_conv_leaky_kernel(%arg0: i32, %arg1: memref<8x32xf32, #tpu.memory_space<vmem>>, %arg2: memref<32x256xf32, #tpu.memory_space<vmem>>, %arg3: memref<1x8x256xf32, #tpu.memory_space<vmem>>) attributes {dimension_semantics = [#tpu.dimension_semantics<parallel>], iteration_bounds = array<i64: 2>, scalar_prefetch = 0 : i64, scratch_operands = 0 : i64, tpu.core_type = #tpu.core_type<tc>, window_params = [{pipeline_mode = #tpu.pipeline_mode<synchronous>, transform_indices = @transform_0, window_bounds = array<i64: 8, 32>}, {transform_indices = @transform_1, window_bounds = array<i64: 32, 256>}, {transform_indices = @transform_2, window_bounds = array<i64: 1, 8, 256>}]} {
    %c0 = arith.constant 0 : index
    %c0_0 = arith.constant 0 : index
    %0 = vector.load %arg1[%c0, %c0_0] : memref<8x32xf32, #tpu.memory_space<vmem>>, vector<8x32xf32>
    %c0_1 = arith.constant 0 : index
    %c0_2 = arith.constant 0 : index
    %1 = vector.load %arg2[%c0_1, %c0_2] : memref<32x256xf32, #tpu.memory_space<vmem>>, vector<32x256xf32>
    %cst = arith.constant dense<0.000000e+00> : vector<8x256xf32>
    %2 = tpu.matmul %0, %1, %cst {dimension_numbers = #tpu.dot_dimension_numbers<[1], [0], [0], [1], [0, 0, 1, 1], [], []>} : vector<8x32xf32>, vector<32x256xf32>, vector<8x256xf32> -> vector<8x256xf32>
    %cst_3 = arith.constant 0.000000e+00 : f32
    %3 = vector.broadcast %cst_3 : f32 to vector<8x256xf32>
    %4 = arith.cmpf ogt, %2, %3 : vector<8x256xf32>
    %cst_4 = arith.constant -0.00999999977 : f32
    %5 = vector.broadcast %cst_4 : f32 to vector<8x256xf32>
    %6 = arith.mulf %2, %5 : vector<8x256xf32>
    %7 = arith.select %4, %2, %6 : vector<8x256xi1>, vector<8x256xf32>
    %c0_5 = arith.constant 0 : index
    %c0_6 = arith.constant 0 : index
    %c0_7 = arith.constant 0 : index
    %8 = vector.load %arg3[%c0_5, %c0_6, %c0_7] : memref<1x8x256xf32, #tpu.memory_space<vmem>>, vector<1x8x256xf32>
    %9 = vector.shape_cast %8 : vector<1x8x256xf32> to vector<8x256xf32>
    %10 = vector.shape_cast %7 : vector<8x256xf32> to vector<1x8x256xf32>
    tpu.vector_store %arg3[%c0_5, %c0_6, %c0_7], %10 {strides = array<i32>} : memref<1x8x256xf32, #tpu.memory_space<vmem>>, vector<1x8x256xf32>,
    return
  }
  func.func @transform_0(%arg0: i32) -> (i32, i32) {
    %c0_i32 = arith.constant 0 : i32
    %c0_i32_0 = arith.constant 0 : i32
    %c0_i32_1 = arith.constant 0 : i32
    return %c0_i32, %c0_i32_0 : i32, i32
  }
  func.func @transform_1(%arg0: i32) -> (i32, i32) {
    %c0_i32 = arith.constant 0 : i32
    %c0_i32_0 = arith.constant 0 : i32
    return %c0_i32, %arg0 : i32, i32
  }
  func.func @transform_2(%arg0: i32) -> (i32, i32, i32) {
    %c0_i32 = arith.constant 0 : i32
    %c0_i32_0 = arith.constant 0 : i32
    %c0_i32_1 = arith.constant 0 : i32
    return %arg0, %c0_i32, %c0_i32_0 : i32, i32, i32
  }
}

</mosaic_0001>

<llo_original>
// kernel: model3_forward.1
$region0: #{model3_forward.1}
  #allocation0 [shape = 'u32[]', space=smem, size = 0x4, offset = 0x4, fixed_abs, tag = 'smem constant byte address 0x4 - core index']
  #allocation1 [shape = 'u32[144,128]{1,0:T(1,128)}', space=vmem, size = 0x12000, scoped, tag = 'internal scratch']
  %s0 = inlined_call_operand.vmem [shape: f32[8,32], index: 0, kind: input, shape index: {}]
  %s1 = inlined_call_operand.vmem [shape: f32[32,512], index: 1, kind: input, shape index: {}]
  %s2 = inlined_call_operand.vmem [shape: f32[2,8,256], index: 2, kind: output, shape index: {}]
  %s3 = sld [smem:[#allocation0]]
  $region64: #{model3_forward.1} parent=0
    _
  %s5 = ssub.s32 1, %s3
  %s6 = scalar_select 0, %s5, %s3
  $region1: #{model3_forward.1} parent=0
    #allocation2 [shape = 'u8[65536]{0}', space=vmem, size = 0x10000, scoped, tag = 'input window, operand 1']
    loop: start=0, step=1, limit=4
    $region2: #{model3_forward.1} parent=1 // loop_pre_header
      _
    $region3: #{model3_forward.1} parent=1 // loop_header
      %s8 = sphi 0, %s12
      %p9 = scmp.ge.s32.totalorder %s8, 4
      %s16 = sphi 0, %s16
      %s18 = sphi 0, %s16
      %s19 = sphi 0, %s18
      %s33 = sphi 0, %s19
      %s39 = sphi 0, %s41
      %s42 = sphi 0, %s39
      %s43 = sphi 0, %s42
      %s59 = sphi 0, %s43
      %s65 = sphi 0, %s67
      %s68 = sphi 0, %s65
      %s69 = sphi 0, %s68
      %s85 = sphi 0, %s69
    $region4: #{model3_forward.1} parent=1 // loop_header_branch
      %11 = sbr.rel (%p9) target = $region8
    $region5: #{model3_forward.1} parent=1 // loop_body
      %s13 = ssub.s32 %s8, 1
      %s14 = ssub.s32 %s8, 2
      %s15 = sadd.s32 %s8, 1
      %s17 = sadd.s32 %s16, 1
      %p20 = scmp.eq.s32.totalorder %s8, 1
      %p21 = scmp.ne.s32.totalorder %s16, %s18
      %p22 = scmp.eq.s32.totalorder %s8, 0
      %p23 = por %p21, %p22
      %p24 = scmp.ne.s32.totalorder %s16, %s18
      %p25 = scmp.eq.s32.totalorder %s13, 1
      %p26 = por %p24, %p25
      %p27 = scmp.ne.s32.totalorder %s18, %s19
      %p28 = scmp.eq.s32.totalorder %s13, 0
      %p29 = por %p27, %p28
      %p30 = scmp.ne.s32.totalorder %s18, %s19
      %p31 = scmp.eq.s32.totalorder %s14, 1
      %p32 = por %p30, %p31
      %p34 = scmp.ne.s32.totalorder %s19, %s33
      %p35 = scmp.eq.s32.totalorder %s14, 0
      %p36 = por %p34, %p35
      %s37 = ssub.s32 %s8, %s15
      %p38 = scmp.eq.s32.totalorder %s37, 0
      %s40 = sadd.s32 %s39, 1
      %s41 = scalar_select %p38, %s39, %s40
      %p44 = pneg %p38
      %p45 = scmp.eq.s32.totalorder %s8, 1
      %p46 = por %p44, %p45
      %p47 = scmp.ne.s32.totalorder %s39, %s42
      %p48 = scmp.eq.s32.totalorder %s8, 0
      %p49 = por %p47, %p48
      %p50 = scmp.ne.s32.totalorder %s39, %s42
      %p51 = scmp.eq.s32.totalorder %s13, 1
      %p52 = por %p50, %p51
      %p53 = scmp.ne.s32.totalorder %s42, %s43
      %p54 = scmp.eq.s32.totalorder %s13, 0
      %p55 = por %p53, %p54
      %p56 = scmp.ne.s32.totalorder %s42, %s43
      %p57 = scmp.eq.s32.totalorder %s14, 1
      %p58 = por %p56, %p57
      %p60 = scmp.ne.s32.totalorder %s43, %s59
      %p61 = scmp.eq.s32.totalorder %s14, 0
      %p62 = por %p60, %p61
      %s63 = ssub.s32 %s8, %s15
      %p64 = scmp.eq.s32.totalorder %s63, 0
      %s66 = sadd.s32 %s65, 1
      %s67 = scalar_select %p64, %s65, %s66
      %p70 = pneg %p64
      %p71 = scmp.eq.s32.totalorder %s8, 1
      %p72 = por %p70, %p71
      %p73 = scmp.ne.s32.totalorder %s65, %s68
      %p74 = scmp.eq.s32.totalorder %s8, 0
      %p75 = por %p73, %p74
      %p76 = scmp.ne.s32.totalorder %s65, %s68
      %p77 = scmp.eq.s32.totalorder %s13, 1
      %p78 = por %p76, %p77
      %p79 = scmp.ne.s32.totalorder %s68, %s69
      %p80 = scmp.eq.s32.totalorder %s13, 0
      %p81 = por %p79, %p80
      %p82 = scmp.ne.s32.totalorder %s68, %s69
      %p83 = scmp.eq.s32.totalorder %s14, 1
      %p84 = por %p82, %p83
      %p86 = scmp.ne.s32.totalorder %s69, %s85
      %p87 = scmp.eq.s32.totalorder %s14, 0
      %p88 = por %p86, %p87
      %p89 = scmp.le.s32.totalorder 1, %s8
      %p90 = scmp.lt.s32.totalorder %s8, 3
      %p91 = pnand %p89, %p90
      %p92 = pneg %p91
      // Predicated region
      $region9: #{model3_forward.1} parent=5 // pred_check
        _
      $region10: #{model3_forward.1} parent=5 // pred_check_branch
        %94 = sbr.rel (%p91) target = $region12
      $region11: #{model3_forward.1} parent=5 // pred_region
        %s95 = ssub.s32 %s8, 1
        // Predicated region
        $region13: #{model3_forward.1} parent=11 // pred_check
          %p96 = pneg %p29
        $region14: #{model3_forward.1} parent=11 // pred_check_branch
          %98 = sbr.rel (%p96) target = $region16
        $region15: #{model3_forward.1} parent=11 // pred_region
          _
        $region16: #{model3_forward.1} parent=11 // pred_fallthru
          _
      $region12: #{model3_forward.1} parent=5 // pred_fallthru
        _
      %p99 = scmp.lt.s32.totalorder %s8, 2
      // Predicated region
      $region17: #{model3_forward.1} parent=5 // pred_check
        %p100 = pneg %p99
      $region18: #{model3_forward.1} parent=5 // pred_check_branch
        %102 = sbr.rel (%p100) target = $region20
      $region19: #{model3_forward.1} parent=5 // pred_region
        // Predicated region
        $region21: #{model3_forward.1} parent=19 // pred_check
          %p103 = pneg %p49
        $region22: #{model3_forward.1} parent=19 // pred_check_branch
          %105 = sbr.rel (%p103) target = $region24
        $region23: #{model3_forward.1} parent=19 // pred_region
          %s106 = sand.u32 %s39, 1
          %s107 = sand.u32 %s39, 1
          %s108 = smul.addr %s107, 64
          %s109 = scalar_lea.vmem [#allocation2], %s108
          %s110 = smul.u32 2, %s8
          %s111 = smul.addr %s110, 8
          %s112 = scalar_lea.vmem %s1, %s111
          // Predicated region
          $region25: #{model3_forward.1} parent=23 // pred_check
            _
          $region26: #{model3_forward.1} parent=23 // pred_check_branch
            %114 = sbr.rel (0) target = $region28
          $region27: #{model3_forward.1} parent=23 // pred_region
            // Predicated region
            $region29: #{model3_forward.1} parent=27 // pred_check
              _
            $region30: #{model3_forward.1} parent=27 // pred_check_branch
              %116 = sbr.rel (0) target = $region32
            $region31: #{model3_forward.1} parent=27 // pred_region
              loop: start=0, step=1, limit=1
              $region33: #{model3_forward.1} parent=31 // loop_pre_header
                _
              $region34: #{model3_forward.1} parent=31 // loop_header
                %s118 = sphi 0, %s122
                %p119 = scmp.ge.s32.totalorder %s118, 1
                %s123 = sphi %s112, %s112
                %s124 = sphi %s109, %s109
              $region35: #{model3_forward.1} parent=31 // loop_header_branch
                %121 = sbr.rel (%p119) target = $region39
              $region36: #{model3_forward.1} parent=31 // loop_body
                %v125 = vld [vmem:[%s123] sm:$0xff]
                %126 = vst [vmem:[%s124] sm:$0xff] %v125
                %v127 = vld [vmem:[%s123 + $0x8] sm:$0xff]
                %128 = vst [vmem:[%s124 + $0x8] sm:$0xff] %v127
                %v129 = vld [vmem:[%s123 + $0x20] sm:$0xff]
                %130 = vst [vmem:[%s124 + $0x10] sm:$0xff] %v129
                %v131 = vld [vmem:[%s123 + $0x28] sm:$0xff]
                %132 = vst [vmem:[%s124 + $0x18] sm:$0xff] %v131
                %v133 = vld [vmem:[%s123 + $0x40] sm:$0xff]
                %134 = vst [vmem:[%s124 + $0x20] sm:$0xff] %v133
                %v135 = vld [vmem:[%s123 + $0x48] sm:$0xff]
                %136 = vst [vmem:[%s124 + $0x28] sm:$0xff] %v135
                %v137 = vld [vmem:[%s123 + $0x60] sm:$0xff]
                %138 = vst [vmem:[%s124 + $0x30] sm:$0xff] %v137
                %v139 = vld [vmem:[%s123 + $0x68] sm:$0xff]
                %140 = vst [vmem:[%s124 + $0x38] sm:$0xff] %v139
              $region37: #{model3_forward.1} parent=31 // loop_footer
                %s122 = sadd.s32 1, %s118
              $region38: #{model3_forward.1} parent=31 // loop_footer_branch
                %117 = sbr.rel target = $region34
              $region39: #{model3_forward.1} parent=31 // loop_exit
                _
            $region32: #{model3_forward.1} parent=27 // pred_fallthru
              _
            // Predicated region
            $region40: #{model3_forward.1} parent=27 // pred_check
              _
            $region41: #{model3_forward.1} parent=27 // pred_check_branch
              %142 = sbr.rel target = $region43
            $region42: #{model3_forward.1} parent=27 // pred_region
              _
            $region43: #{model3_forward.1} parent=27 // pred_fallthru
              _
          $region28: #{model3_forward.1} parent=23 // pred_fallthru
            _
          %143 = vnop
        $region24: #{model3_forward.1} parent=19 // pred_fallthru
          _
      $region20: #{model3_forward.1} parent=5 // pred_fallthru
        _
      %p144 = scmp.le.s32.totalorder 1, %s8
      %p145 = scmp.lt.s32.totalorder %s8, 3
      %p146 = pnand %p144, %p145
      %p147 = pneg %p146
      // Predicated region
      $region44: #{model3_forward.1} parent=5 // pred_check
        _
      $region45: #{model3_forward.1} parent=5 // pred_check_branch
        %149 = sbr.rel (%p146) target = $region47
      $region46: #{model3_forward.1} parent=5 // pred_region
        %s150 = ssub.s32 %s8, 1
        %s151 = sand.u32 %s42, 1
        %s152 = sand.u32 %s42, 1
        %s153 = smul.addr %s152, 64
        %s154 = scalar_lea.vmem [#allocation2], %s153
        // Predicated region
        $region48: #{model3_forward.1} parent=46 // pred_check
          %p155 = pneg %p55
        $region49: #{model3_forward.1} parent=46 // pred_check_branch
          %157 = sbr.rel (%p155) target = $region51
        $region50: #{model3_forward.1} parent=46 // pred_region
          _
        $region51: #{model3_forward.1} parent=46 // pred_fallthru
          _
        %p158 = pneg %p29
        %p159 = pneg %p26
        %s160 = sand.u32 %s42, 1
        %s161 = sand.u32 %s42, 1
        %s162 = smul.addr %s161, 64
        %s163 = scalar_lea.vmem [#allocation2], %s162
        %p164 = pneg %p55
        %p165 = pneg %p52
        %p166 = pneg %p81
        %p167 = pneg %p78
        %p168 = scmp.lt.s32.totalorder %s13, 1
        %s169 = scalar_select %p168, %s13, 1
        %s170 = smul.addr %s169, 2
        %s171 = smul.addr %s170, 8
        %s172 = scalar_lea.vmem %s2, %s171
        %s173 = smul.u32 2, %s13
        %p174 = scmp.lt.s32.totalorder %s13, 1
        %s175 = scalar_select %p174, %s13, 1
        %s176 = smul.addr %s175, 2
        %s177 = smul.addr %s176, 8
        %s178 = scalar_lea.vmem %s2, %s177
        %v179 = vld [vmem:[%s0] sm:$0xff]
        %v180 = vld [vmem:[%s154] sm:$0xff]
        %v181 = vld [vmem:[%s154 + $0x8] sm:$0xff]
        %v182 = vld [vmem:[%s154 + $0x10] sm:$0xff]
        %v183 = vld [vmem:[%s154 + $0x18] sm:$0xff]
        %v184 = vld [vmem:[%s154 + $0x20] sm:$0xff]
        %v185 = vld [vmem:[%s154 + $0x28] sm:$0xff]
        %v186 = vld [vmem:[%s154 + $0x30] sm:$0xff]
        %v187 = vld [vmem:[%s154 + $0x38] sm:$0xff]
        %vm188 = vcmask 261120
        %v190 = vsel %vm188, %v179, 0
        %192 = vmatprep.subr.mxu0 %v181
        %193 = vmatpush1.msra.mxu0 %v180
        %194 = vmatprep.subr.mxu0 %v183
        %195 = vmatpush1.msra.mxu0 %v182
        %196 = vmatprep.subr.mxu0 %v185
        %197 = vmatpush1.msra.mxu0 %v184
        %198 = vmatprep.subr.mxu0 %v187
        %199 = vmatpush1.msra.mxu0 %v186
        %200 = vmatprep.subr.mxu0 0.0
        %201 = vmatpush1.msra.mxu0 0.0
        %202 = vmatprep.subr.mxu0 0.0
        %203 = vmatpush1.msra.mxu0 0.0
        %204 = vmatprep.subr.mxu0 0.0
        %205 = vmatpush1.msra.mxu0 0.0
        %206 = vmatprep.subr.mxu0 0.0
        %207 = vmatpush1.msra.mxu0 0.0
        %208 = vmatprep.subr.mxu0 0.0
        %209 = vmatpush1.msra.mxu0 0.0
        %210 = vmatprep.subr.mxu0 0.0
        %211 = vmatpush1.msra.mxu0 0.0
        %212 = vmatprep.subr.mxu0 0.0
        %213 = vmatpush1.msra.mxu0 0.0
        %214 = vmatprep.subr.mxu0 0.0
        %215 = vmatpush1.msra.mxu0 0.0
        %216 = vmatprep.subr.mxu0 0.0
        %217 = vmatpush1.msra.mxu0 0.0
        %218 = vmatprep.subr.mxu0 0.0
        %219 = vmatpush1.msra.mxu0 0.0
        %220 = vmatprep.subr.mxu0 0.0
        %221 = vmatpush1.msra.mxu0 0.0
        %222 = vmatprep.subr.mxu0 0.0
        %223 = vmatpush1.msra.mxu0 0.0
        %224 = vmatprep.subr.mxu0 0.0
        %225 = vmatpush1.msra.mxu0 0.0
        %226 = vmatprep.subr.mxu0 0.0
        %227 = vmatpush1.msra.mxu0 0.0
        %228 = vmatprep.subr.mxu0 0.0
        %229 = vmatpush1.msra.mxu0 0.0
        %230 = vmatprep.subr.mxu0 0.0
        %231 = vmatpush1.msra.mxu0 0.0
        %232 = vmatprep.subr.mxu0 0.0
        %233 = vmatpush1.msra.mxu0 0.0
        %234 = vmatprep.subr.mxu0 0.0
        %235 = vmatpush1.msra.mxu0 0.0
        %236 = vmatprep.subr.mxu0 0.0
        %237 = vmatpush1.msra.mxu0 0.0
        %238 = vmatprep.subr.mxu0 0.0
        %239 = vmatpush1.msra.mxu0 0.0
        %240 = vmatprep.subr.mxu0 0.0
        %241 = vmatpush1.msra.mxu0 0.0
        %242 = vmatprep.subr.mxu0 0.0
        %243 = vmatpush1.msra.mxu0 0.0
        %244 = vmatprep.subr.mxu0 0.0
        %245 = vmatpush1.msra.mxu0 0.0
        %246 = vmatprep.subr.mxu0 0.0
        %247 = vmatpush1.msra.mxu0 0.0
        %248 = vmatprep.subr.mxu0 0.0
        %249 = vmatpush1.msra.mxu0 0.0
        %250 = vmatprep.subr.mxu0 0.0
        %251 = vmatpush1.msra.mxu0 0.0
        %252 = vmatprep.subr.mxu0 0.0
        %253 = vmatpush1.msra.mxu0 0.0
        %254 = vmatprep.subr.mxu0 0.0
        %255 = vmatpush1.msra.mxu0 0.0
        %256 = vmatprep.mubr.f32.mxu0 0.0
        %257 = vmatmul.mubr.f32.gmra.mrb[0].mxu0 %v190
        %v258 = vpop.f32.mrb[0].mxu0
        %v259 = vadd.f32 0.0, %v258
        %v260 = vpop.f32.mrb[0].mxu0
        %v261 = vadd.f32 0.0, %v260
        %262 = vdwg.mxu0
        %vm263 = vcmp.gt.f32.partialorder %v259, 0.0
        %vm264 = vcmp.gt.f32.partialorder %v261, 0.0
        %v265 = vmul.f32 %v259, -0.01
        %v266 = vmul.f32 %v261, -0.01
        %v267 = vsel %vm263, %v259, %v265
        %v268 = vsel %vm264, %v261, %v266
        %269 = vst [vmem:[%s178] sm:$0xff] %v267
        %270 = vst [vmem:[%s178 + $0x8] sm:$0xff] %v268
        %p271 = scmp.lt.s32.totalorder %s13, 1
        %s272 = scalar_select %p271, %s13, 1
        %s273 = smul.addr %s272, 2
        %s274 = smul.addr %s273, 8
        %s275 = scalar_lea.vmem %s2, %s274
        // Predicated region
        $region52: #{model3_forward.1} parent=46 // pred_check
          %p276 = pneg %p78
        $region53: #{model3_forward.1} parent=46 // pred_check_branch
          %278 = sbr.rel (%p276) target = $region55
        $region54: #{model3_forward.1} parent=46 // pred_region
          _
        $region55: #{model3_forward.1} parent=46 // pred_fallthru
          _
      $region47: #{model3_forward.1} parent=5 // pred_fallthru
        _
      %p279 = scmp.le.s32.totalorder 2, %s8
      // Predicated region
      $region56: #{model3_forward.1} parent=5 // pred_check
        %p280 = pneg %p279
      $region57: #{model3_forward.1} parent=5 // pred_check_branch
        %282 = sbr.rel (%p280) target = $region59
      $region58: #{model3_forward.1} parent=5 // pred_region
        %s283 = ssub.s32 %s8, 2
        // Predicated region
        $region60: #{model3_forward.1} parent=58 // pred_check
          %p284 = pneg %p84
        $region61: #{model3_forward.1} parent=58 // pred_check_branch
          %286 = sbr.rel (%p284) target = $region63
        $region62: #{model3_forward.1} parent=58 // pred_region
          %p287 = scmp.lt.s32.totalorder %s14, 1
          %s288 = scalar_select %p287, %s14, 1
          %s289 = smul.addr %s288, 2
          %s290 = smul.addr %s289, 8
          %s291 = scalar_lea.vmem %s2, %s290
        $region63: #{model3_forward.1} parent=58 // pred_fallthru
          _
      $region59: #{model3_forward.1} parent=5 // pred_fallthru
        _
    $region6: #{model3_forward.1} parent=1 // loop_footer
      %s12 = sadd.s32 1, %s8
    $region7: #{model3_forward.1} parent=1 // loop_footer_branch
      %7 = sbr.rel target = $region3
    $region8: #{model3_forward.1} parent=1 // loop_exit
      _

</llo_original>
